<compile_context>
chip_gen: v7x
topology: tpu7x:2x2x1
jax: 0.10.0
libtpu: 0.0.40
codegen_flags: <defaults>
</compile_context>

<pallas_src>
import functools

import jax
import jax.numpy as jnp
from jax.experimental import pallas as pl
from jax.experimental.pallas import tpu as pltpu


def _pool_matrix(in_dim, k, s, out_dim):
    """(out_dim, in_dim) matrix so that P @ v averages each length-k window."""
    rows = jnp.arange(out_dim)[:, None]          # (out_dim, 1)
    cols = jnp.arange(in_dim)[None, :]           # (1, in_dim)
    start = rows * s
    mask = (cols >= start) & (cols < start + k)
    return mask.astype(jnp.float32) / float(k)   # average, divisor = k


def _choose_batch(nc, slab_bytes, target_bytes=2 << 20, min_grid=2):
    """Largest divisor B of nc with B*slab_bytes <= target; prefer nc//B >= min_grid."""
    divisors = []
    d = 1
    while d * d <= nc:
        if nc % d == 0:
            divisors.append(d)
            divisors.append(nc // d)
        d += 1
    cap = max(1, target_bytes // max(1, slab_bytes))
    fitting = [b for b in divisors if b <= cap]
    preferred = [b for b in fitting if nc // b >= min_grid]
    pool = preferred if preferred else fitting
    return max(pool) if pool else 1


def _ua_avgpool_kernel(p_ref, xm_ref, xv_ref, ym_ref, yv_ref, *, var_scale):
    p = p_ref[...]             # (H*W, h_out*w_out) fused pooling matrix
    xm = xm_ref[0]             # (B, H*W) — native dtype straight into the MXU
    xv = xv_ref[0]             # (B, H*W)

    # mean map: avg_pool(x_mean);  variance map: (1/k^2) * avg_pool(x_var)
    ym = jnp.dot(xm, p, preferred_element_type=jnp.float32)        # (B, h_out*w_out)
    yv = jnp.dot(xv, p, preferred_element_type=jnp.float32) * var_scale

    ym_ref[0] = ym.astype(ym_ref.dtype)
    yv_ref[0] = yv.astype(yv_ref.dtype)


def ua_avg_pool2d(x_mean, x_var, kernel_size, stride):
    """Pallas implementation of UAAvgPool2d.forward([x_mean, x_var])."""
    assert x_mean.shape == x_var.shape
    n, c, h, w = x_mean.shape
    k, s = int(kernel_size), int(stride)
    assert k >= 1 and s >= 1
    assert h >= k and w >= k, "spatial dims must be >= kernel_size (VALID pooling)"
    h_out = (h - k) // s + 1
    w_out = (w - k) // s + 1
    hw = h * w
    how = h_out * w_out

    # Fused 2-D pooling matrix: y_flat = x_flat @ kron(P_h, P_w)^T.
    ph = _pool_matrix(h, k, s, h_out)                 # (h_out, H)
    pw = _pool_matrix(w, k, s, w_out)                 # (w_out, W)
    p2d = jnp.kron(ph, pw).T.astype(x_mean.dtype)     # (H*W, h_out*w_out)

    nc = n * c
    itemsize = jnp.dtype(x_mean.dtype).itemsize
    b = _choose_batch(nc, hw * itemsize)              # slabs per grid step
    g = nc // b

    # Free, contiguous reshapes: lane-dense (H*W-wide) batched slabs.
    xm3 = x_mean.reshape(g, b, hw)
    xv3 = x_var.reshape(g, b, hw)

    kernel = functools.partial(_ua_avgpool_kernel, var_scale=1.0 / float(k) ** 2)

    grid_spec = pltpu.PrefetchScalarGridSpec(
        num_scalar_prefetch=0,
        grid=(g,),
        in_specs=[
            pl.BlockSpec((hw, how), lambda i: (0, 0)),       # pooling matrix (replicated)
            pl.BlockSpec((1, b, hw), lambda i: (i, 0, 0)),   # x_mean batch of slabs
            pl.BlockSpec((1, b, hw), lambda i: (i, 0, 0)),   # x_var batch of slabs
        ],
        out_specs=[
            pl.BlockSpec((1, b, how), lambda i: (i, 0, 0)),
            pl.BlockSpec((1, b, how), lambda i: (i, 0, 0)),
        ],
    )

    cost = pl.CostEstimate(
        flops=2 * 2 * nc * hw * how,                      # 2 streams, mul+add
        transcendentals=0,
        bytes_accessed=(2 * nc * hw + 2 * nc * how + hw * how) * itemsize,
    )

    y_mean3, y_var3 = pl.pallas_call(
        kernel,
        out_shape=(
            jax.ShapeDtypeStruct((g, b, how), x_mean.dtype),
            jax.ShapeDtypeStruct((g, b, how), x_var.dtype),
        ),
        grid_spec=grid_spec,
        compiler_params=pltpu.CompilerParams(
            dimension_semantics=("parallel",),
            vmem_limit_bytes=32 * 1024 * 1024,
        ),
        cost_estimate=cost,
    )(p2d, xm3, xv3)

    return [
        y_mean3.reshape(n, c, h_out, w_out),
        y_var3.reshape(n, c, h_out, w_out),
    ]


def _reference(x_mean, x_var, k, s):
    """Pure-JAX reference (matches nn.AvgPool2d, no padding)."""
    def avgpool(x):
        return jax.lax.reduce_window(
            x, 0.0, jax.lax.add,
            window_dimensions=(1, 1, k, k),
            window_strides=(1, 1, s, s),
            padding="VALID") / float(k * k)
    return avgpool(x_mean), (1.0 / k ** 2) * avgpool(x_var)


if __name__ == "__main__":
    key = jax.random.PRNGKey(0)
    k_mean, k_var = jax.random.split(key)

    batch, ch, d = 2, 4, 16
    kernel_size, stride = 2, 2

    x_mean = jax.random.normal(k_mean, (batch, ch, d, d), dtype=jnp.float32)
    x_var = jax.nn.softplus(
        jax.random.normal(k_var, (batch, ch, d, d), dtype=jnp.float32))

    y_mean, y_var = ua_avg_pool2d(x_mean, x_var, kernel_size, stride)
    jax.block_until_ready(y_mean)
    jax.block_until_ready(y_var)

    ref_mean, ref_var = _reference(x_mean, x_var, kernel_size, stride)
    assert y_mean.shape == (batch, ch, d // stride, d // stride)
    assert y_var.shape == (batch, ch, d // stride, d // stride)
    assert jnp.allclose(y_mean, ref_mean, atol=1e-5, rtol=1e-5)
    assert jnp.allclose(y_var, ref_var, atol=1e-5, rtol=1e-5)

    print("KERNEL_OK")
</pallas_src>

<mosaic_0001>
module attributes {stable_mosaic.version = 11 : i64} {
  func.func @_ua_avgpool_kernel(%arg0: i32, %arg1: memref<256x64xf32, #tpu.memory_space<vmem>>, %arg2: memref<1x4x256xf32, #tpu.memory_space<vmem>>, %arg3: memref<1x4x256xf32, #tpu.memory_space<vmem>>, %arg4: memref<1x4x64xf32, #tpu.memory_space<vmem>>, %arg5: memref<1x4x64xf32, #tpu.memory_space<vmem>>) attributes {dimension_semantics = [#tpu.dimension_semantics<parallel>], iteration_bounds = array<i64: 2>, scalar_prefetch = 0 : i64, scratch_operands = 0 : i64, tpu.core_type = #tpu.core_type<tc>, window_params = [{pipeline_mode = #tpu.pipeline_mode<synchronous>, transform_indices = @transform_0, window_bounds = array<i64: 256, 64>}, {transform_indices = @transform_1, window_bounds = array<i64: 1, 4, 256>}, {transform_indices = @transform_2, window_bounds = array<i64: 1, 4, 256>}, {transform_indices = @transform_3, window_bounds = array<i64: 1, 4, 64>}, {transform_indices = @transform_4, window_bounds = array<i64: 1, 4, 64>}]} {
    %c0 = arith.constant 0 : index
    %c0_0 = arith.constant 0 : index
    %0 = vector.load %arg1[%c0, %c0_0] : memref<256x64xf32, #tpu.memory_space<vmem>>, vector<256x64xf32>
    %c0_1 = arith.constant 0 : index
    %c0_2 = arith.constant 0 : index
    %c0_3 = arith.constant 0 : index
    %1 = vector.load %arg2[%c0_1, %c0_2, %c0_3] : memref<1x4x256xf32, #tpu.memory_space<vmem>>, vector<1x4x256xf32>
    %2 = vector.shape_cast %1 : vector<1x4x256xf32> to vector<4x256xf32>
    %c0_4 = arith.constant 0 : index
    %c0_5 = arith.constant 0 : index
    %c0_6 = arith.constant 0 : index
    %3 = vector.load %arg3[%c0_4, %c0_5, %c0_6] : memref<1x4x256xf32, #tpu.memory_space<vmem>>, vector<1x4x256xf32>
    %4 = vector.shape_cast %3 : vector<1x4x256xf32> to vector<4x256xf32>
    %cst = arith.constant dense<0.000000e+00> : vector<4x64xf32>
    %5 = tpu.matmul %2, %0, %cst {dimension_numbers = #tpu.dot_dimension_numbers<[1], [0], [0], [1], [0, 0, 1, 1], [], []>} : vector<4x256xf32>, vector<256x64xf32>, vector<4x64xf32> -> vector<4x64xf32>
    %cst_7 = arith.constant dense<0.000000e+00> : vector<4x64xf32>
    %6 = tpu.matmul %4, %0, %cst_7 {dimension_numbers = #tpu.dot_dimension_numbers<[1], [0], [0], [1], [0, 0, 1, 1], [], []>} : vector<4x256xf32>, vector<256x64xf32>, vector<4x64xf32> -> vector<4x64xf32>
    %cst_8 = arith.constant 2.500000e-01 : f32
    %7 = vector.broadcast %cst_8 : f32 to vector<4x64xf32>
    %8 = arith.mulf %6, %7 : vector<4x64xf32>
    %c0_9 = arith.constant 0 : index
    %c0_10 = arith.constant 0 : index
    %c0_11 = arith.constant 0 : index
    %9 = vector.load %arg4[%c0_9, %c0_10, %c0_11] : memref<1x4x64xf32, #tpu.memory_space<vmem>>, vector<1x4x64xf32>
    %10 = vector.shape_cast %9 : vector<1x4x64xf32> to vector<4x64xf32>
    %11 = vector.shape_cast %5 : vector<4x64xf32> to vector<1x4x64xf32>
    tpu.vector_store %arg4[%c0_9, %c0_10, %c0_11], %11 {strides = array<i32>} : memref<1x4x64xf32, #tpu.memory_space<vmem>>, vector<1x4x64xf32>,
    %c0_12 = arith.constant 0 : index
    %c0_13 = arith.constant 0 : index
    %c0_14 = arith.constant 0 : index
    %12 = vector.load %arg5[%c0_12, %c0_13, %c0_14] : memref<1x4x64xf32, #tpu.memory_space<vmem>>, vector<1x4x64xf32>
    %13 = vector.shape_cast %12 : vector<1x4x64xf32> to vector<4x64xf32>
    %14 = vector.shape_cast %8 : vector<4x64xf32> to vector<1x4x64xf32>
    tpu.vector_store %arg5[%c0_12, %c0_13, %c0_14], %14 {strides = array<i32>} : memref<1x4x64xf32, #tpu.memory_space<vmem>>, vector<1x4x64xf32>,
    return
  }
  func.func @transform_0(%arg0: i32) -> (i32, i32) {
    %c0_i32 = arith.constant 0 : i32
    %c0_i32_0 = arith.constant 0 : i32
    %c0_i32_1 = arith.constant 0 : i32
    return %c0_i32, %c0_i32_0 : i32, i32
  }
  func.func @transform_1(%arg0: i32) -> (i32, i32, i32) {
    %c0_i32 = arith.constant 0 : i32
    %c0_i32_0 = arith.constant 0 : i32
    %c0_i32_1 = arith.constant 0 : i32
    return %arg0, %c0_i32, %c0_i32_0 : i32, i32, i32
  }
  func.func @transform_2(%arg0: i32) -> (i32, i32, i32) {
    %c0_i32 = arith.constant 0 : i32
    %c0_i32_0 = arith.constant 0 : i32
    %c0_i32_1 = arith.constant 0 : i32
    return %arg0, %c0_i32, %c0_i32_0 : i32, i32, i32
  }
  func.func @transform_3(%arg0: i32) -> (i32, i32, i32) {
    %c0_i32 = arith.constant 0 : i32
    %c0_i32_0 = arith.constant 0 : i32
    %c0_i32_1 = arith.constant 0 : i32
    return %arg0, %c0_i32, %c0_i32_0 : i32, i32, i32
  }
  func.func @transform_4(%arg0: i32) -> (i32, i32, i32) {
    %c0_i32 = arith.constant 0 : i32
    %c0_i32_0 = arith.constant 0 : i32
    %c0_i32_1 = arith.constant 0 : i32
    return %arg0, %c0_i32, %c0_i32_0 : i32, i32, i32
  }
}

</mosaic_0001>

<llo_original>
// kernel: tpu_custom_call.1
$region0: #{tpu_custom_call.1}
  #allocation0 [shape = 'u32[]', space=smem, size = 0x4, offset = 0x4, fixed_abs, tag = 'smem constant byte address 0x4 - core index']
  #allocation1 [shape = 'u32[144,128]{1,0:T(1,128)}', space=vmem, size = 0x12000, scoped, tag = 'internal scratch']
  %s0 = inlined_call_operand.vmem [shape: f32[256,64], index: 0, kind: input, shape index: {}]
  %s1 = inlined_call_operand.vmem [shape: f32[2,4,256], index: 1, kind: input, shape index: {}]
  %s2 = inlined_call_operand.vmem [shape: f32[2,4,256], index: 2, kind: input, shape index: {}]
  %s3 = inlined_call_operand.hbm [shape: f32[2,4,64], index: 3, kind: output, shape index: {0}]
  %s4 = inlined_call_operand.hbm [shape: f32[2,4,64], index: 4, kind: output, shape index: {1}]
  %5 = xla_tuple %s3, %s4
  %s6 = sld [smem:[#allocation0]]
  $region53: #{tpu_custom_call.1} parent=0
    _
  %s8 = ssub.s32 1, %s6
  %s9 = scalar_select 0, %s8, %s6
  $region1: #{tpu_custom_call.1} parent=0
    #allocation2 [shape = 'u8[4096]{0}', space=vmem, size = 0x1000, scoped, tag = 'output window, operand 0']
    #allocation3 [shape = 's32[2]{0}', space=sflag, size = 0x8, scoped, tag = 'scoped memory for tpu_custom_call.1']
    #allocation4 [shape = 'u8[4096]{0}', space=vmem, size = 0x1000, scoped, tag = 'output window, operand 1']
    #allocation5 [shape = 's32[2]{0}', space=sflag, size = 0x8, scoped, tag = 'scoped memory for tpu_custom_call.1']
    %10 = vsyncpa [#allocation3], 0
    %s11 = scalar_lea.sflag [#allocation3], 1
    %12 = vsyncpa %s11, 0
    %13 = vsyncpa [#allocation5], 0
    %s14 = scalar_lea.sflag [#allocation5], 1
    %15 = vsyncpa %s14, 0
    loop: start=0, step=1, limit=4
    $region2: #{tpu_custom_call.1} parent=1 // loop_pre_header
      _
    $region3: #{tpu_custom_call.1} parent=1 // loop_header
      %s17 = sphi 0, %s21
      %p18 = scmp.ge.s32.totalorder %s17, 4
      %s25 = sphi 0, %s25
      %s27 = sphi 0, %s25
      %s28 = sphi 0, %s27
      %s42 = sphi 0, %s28
      %s48 = sphi 0, %s50
      %s51 = sphi 0, %s48
      %s52 = sphi 0, %s51
      %s68 = sphi 0, %s52
      %s74 = sphi 0, %s76
      %s77 = sphi 0, %s74
      %s78 = sphi 0, %s77
      %s94 = sphi 0, %s78
      %s100 = sphi 0, %s102
      %s103 = sphi 0, %s100
      %s104 = sphi 0, %s103
      %s120 = sphi 0, %s104
      %s126 = sphi 0, %s128
      %s129 = sphi 0, %s126
      %s130 = sphi 0, %s129
      %s146 = sphi 0, %s130
    $region4: #{tpu_custom_call.1} parent=1 // loop_header_branch
      %20 = sbr.rel (%p18) target = $region8
    $region5: #{tpu_custom_call.1} parent=1 // loop_body
      %s22 = ssub.s32 %s17, 1
      %s23 = ssub.s32 %s17, 2
      %s24 = sadd.s32 %s17, 1
      %s26 = sadd.s32 %s25, 1
      %p29 = scmp.eq.s32.totalorder %s17, 1
      %p30 = scmp.ne.s32.totalorder %s25, %s27
      %p31 = scmp.eq.s32.totalorder %s17, 0
      %p32 = por %p30, %p31
      %p33 = scmp.ne.s32.totalorder %s25, %s27
      %p34 = scmp.eq.s32.totalorder %s22, 1
      %p35 = por %p33, %p34
      %p36 = scmp.ne.s32.totalorder %s27, %s28
      %p37 = scmp.eq.s32.totalorder %s22, 0
      %p38 = por %p36, %p37
      %p39 = scmp.ne.s32.totalorder %s27, %s28
      %p40 = scmp.eq.s32.totalorder %s23, 1
      %p41 = por %p39, %p40
      %p43 = scmp.ne.s32.totalorder %s28, %s42
      %p44 = scmp.eq.s32.totalorder %s23, 0
      %p45 = por %p43, %p44
      %s46 = ssub.s32 %s17, %s24
      %p47 = scmp.eq.s32.totalorder %s46, 0
      %s49 = sadd.s32 %s48, 1
      %s50 = scalar_select %p47, %s48, %s49
      %p53 = pneg %p47
      %p54 = scmp.eq.s32.totalorder %s17, 1
      %p55 = por %p53, %p54
      %p56 = scmp.ne.s32.totalorder %s48, %s51
      %p57 = scmp.eq.s32.totalorder %s17, 0
      %p58 = por %p56, %p57
      %p59 = scmp.ne.s32.totalorder %s48, %s51
      %p60 = scmp.eq.s32.totalorder %s22, 1
      %p61 = por %p59, %p60
      %p62 = scmp.ne.s32.totalorder %s51, %s52
      %p63 = scmp.eq.s32.totalorder %s22, 0
      %p64 = por %p62, %p63
      %p65 = scmp.ne.s32.totalorder %s51, %s52
      %p66 = scmp.eq.s32.totalorder %s23, 1
      %p67 = por %p65, %p66
      %p69 = scmp.ne.s32.totalorder %s52, %s68
      %p70 = scmp.eq.s32.totalorder %s23, 0
      %p71 = por %p69, %p70
      %s72 = ssub.s32 %s17, %s24
      %p73 = scmp.eq.s32.totalorder %s72, 0
      %s75 = sadd.s32 %s74, 1
      %s76 = scalar_select %p73, %s74, %s75
      %p79 = pneg %p73
      %p80 = scmp.eq.s32.totalorder %s17, 1
      %p81 = por %p79, %p80
      %p82 = scmp.ne.s32.totalorder %s74, %s77
      %p83 = scmp.eq.s32.totalorder %s17, 0
      %p84 = por %p82, %p83
      %p85 = scmp.ne.s32.totalorder %s74, %s77
      %p86 = scmp.eq.s32.totalorder %s22, 1
      %p87 = por %p85, %p86
      %p88 = scmp.ne.s32.totalorder %s77, %s78
      %p89 = scmp.eq.s32.totalorder %s22, 0
      %p90 = por %p88, %p89
      %p91 = scmp.ne.s32.totalorder %s77, %s78
      %p92 = scmp.eq.s32.totalorder %s23, 1
      %p93 = por %p91, %p92
      %p95 = scmp.ne.s32.totalorder %s78, %s94
      %p96 = scmp.eq.s32.totalorder %s23, 0
      %p97 = por %p95, %p96
      %s98 = ssub.s32 %s17, %s24
      %p99 = scmp.eq.s32.totalorder %s98, 0
      %s101 = sadd.s32 %s100, 1
      %s102 = scalar_select %p99, %s100, %s101
      %p105 = pneg %p99
      %p106 = scmp.eq.s32.totalorder %s17, 1
      %p107 = por %p105, %p106
      %p108 = scmp.ne.s32.totalorder %s100, %s103
      %p109 = scmp.eq.s32.totalorder %s17, 0
      %p110 = por %p108, %p109
      %p111 = scmp.ne.s32.totalorder %s100, %s103
      %p112 = scmp.eq.s32.totalorder %s22, 1
      %p113 = por %p111, %p112
      %p114 = scmp.ne.s32.totalorder %s103, %s104
      %p115 = scmp.eq.s32.totalorder %s22, 0
      %p116 = por %p114, %p115
      %p117 = scmp.ne.s32.totalorder %s103, %s104
      %p118 = scmp.eq.s32.totalorder %s23, 1
      %p119 = por %p117, %p118
      %p121 = scmp.ne.s32.totalorder %s104, %s120
      %p122 = scmp.eq.s32.totalorder %s23, 0
      %p123 = por %p121, %p122
      %s124 = ssub.s32 %s17, %s24
      %p125 = scmp.eq.s32.totalorder %s124, 0
      %s127 = sadd.s32 %s126, 1
      %s128 = scalar_select %p125, %s126, %s127
      %p131 = pneg %p125
      %p132 = scmp.eq.s32.totalorder %s17, 1
      %p133 = por %p131, %p132
      %p134 = scmp.ne.s32.totalorder %s126, %s129
      %p135 = scmp.eq.s32.totalorder %s17, 0
      %p136 = por %p134, %p135
      %p137 = scmp.ne.s32.totalorder %s126, %s129
      %p138 = scmp.eq.s32.totalorder %s22, 1
      %p139 = por %p137, %p138
      %p140 = scmp.ne.s32.totalorder %s129, %s130
      %p141 = scmp.eq.s32.totalorder %s22, 0
      %p142 = por %p140, %p141
      %p143 = scmp.ne.s32.totalorder %s129, %s130
      %p144 = scmp.eq.s32.totalorder %s23, 1
      %p145 = por %p143, %p144
      %p147 = scmp.ne.s32.totalorder %s130, %s146
      %p148 = scmp.eq.s32.totalorder %s23, 0
      %p149 = por %p147, %p148
      %p150 = scmp.le.s32.totalorder 1, %s17
      %p151 = scmp.lt.s32.totalorder %s17, 3
      %p152 = pnand %p150, %p151
      %p153 = pneg %p152
      // Predicated region
      $region9: #{tpu_custom_call.1} parent=5 // pred_check
        _
      $region10: #{tpu_custom_call.1} parent=5 // pred_check_branch
        %155 = sbr.rel (%p152) target = $region12
      $region11: #{tpu_custom_call.1} parent=5 // pred_region
        %s156 = ssub.s32 %s17, 1
        // Predicated region
        $region13: #{tpu_custom_call.1} parent=11 // pred_check
          %p157 = pneg %p38
        $region14: #{tpu_custom_call.1} parent=11 // pred_check_branch
          %159 = sbr.rel (%p157) target = $region16
        $region15: #{tpu_custom_call.1} parent=11 // pred_region
          _
        $region16: #{tpu_custom_call.1} parent=11 // pred_fallthru
          _
      $region12: #{tpu_custom_call.1} parent=5 // pred_fallthru
        _
      %p160 = scmp.lt.s32.totalorder %s17, 2
      // Predicated region
      $region17: #{tpu_custom_call.1} parent=5 // pred_check
        %p161 = pneg %p160
      $region18: #{tpu_custom_call.1} parent=5 // pred_check_branch
        %163 = sbr.rel (%p161) target = $region20
      $region19: #{tpu_custom_call.1} parent=5 // pred_region
        // Predicated region
        $region21: #{tpu_custom_call.1} parent=19 // pred_check
          %p164 = pneg %p58
        $region22: #{tpu_custom_call.1} parent=19 // pred_check_branch
          %166 = sbr.rel (%p164) target = $region24
        $region23: #{tpu_custom_call.1} parent=19 // pred_region
          %p167 = scmp.lt.s32.totalorder %s17, 1
          %s168 = scalar_select %p167, %s17, 1
          %s169 = smul.addr %s168, 2
          %s170 = smul.addr %s169, 4
          %s171 = scalar_lea.vmem %s1, %s170
        $region24: #{tpu_custom_call.1} parent=19 // pred_fallthru
          _
        // Predicated region
        $region25: #{tpu_custom_call.1} parent=19 // pred_check
          %p172 = pneg %p84
        $region26: #{tpu_custom_call.1} parent=19 // pred_check_branch
          %174 = sbr.rel (%p172) target = $region28
        $region27: #{tpu_custom_call.1} parent=19 // pred_region
          %p175 = scmp.lt.s32.totalorder %s17, 1
          %s176 = scalar_select %p175, %s17, 1
          %s177 = smul.addr %s176, 2
          %s178 = smul.addr %s177, 4
          %s179 = scalar_lea.vmem %s2, %s178
        $region28: #{tpu_custom_call.1} parent=19 // pred_fallthru
          _
      $region20: #{tpu_custom_call.1} parent=5 // pred_fallthru
        _
      %p180 = scmp.le.s32.totalorder 1, %s17
      %p181 = scmp.lt.s32.totalorder %s17, 3
      %p182 = pnand %p180, %p181
      %p183 = pneg %p182
      // Predicated region
      $region29: #{tpu_custom_call.1} parent=5 // pred_check
        _
      $region30: #{tpu_custom_call.1} parent=5 // pred_check_branch
        %185 = sbr.rel (%p182) target = $region32
      $region31: #{tpu_custom_call.1} parent=5 // pred_region
        %s186 = ssub.s32 %s17, 1
        %p187 = pneg %p38
        %p188 = pneg %p35
        %p189 = scmp.lt.s32.totalorder %s22, 1
        %s190 = scalar_select %p189, %s22, 1
        %s191 = smul.addr %s190, 2
        %s192 = smul.addr %s191, 4
        %s193 = scalar_lea.vmem %s1, %s192
        %p194 = pneg %p64
        %p195 = pneg %p61
        %p196 = scmp.lt.s32.totalorder %s22, 1
        %s197 = scalar_select %p196, %s22, 1
        %s198 = smul.addr %s197, 2
        %s199 = smul.addr %s198, 4
        %s200 = scalar_lea.vmem %s2, %s199
        %p201 = pneg %p90
        %p202 = pneg %p87
        %p203 = pneg %p116
        %p204 = pneg %p113
        %s205 = sand.u32 %s103, 1
        %s206 = scalar_lea.sflag [#allocation3], %s205
        %s207 = sand.u32 %s103, 1
        %s208 = smul.addr %s207, 4
        %s209 = scalar_lea.vmem [#allocation2], %s208
        %p210 = pneg %p142
        %p211 = pneg %p139
        %s212 = sand.u32 %s129, 1
        %s213 = scalar_lea.sflag [#allocation5], %s212
        %s214 = sand.u32 %s129, 1
        %s215 = smul.addr %s214, 4
        %s216 = scalar_lea.vmem [#allocation4], %s215
        %p217 = scmp.lt.s32.totalorder %s22, 1
        %s218 = scalar_select %p217, %s22, 1
        %s219 = smul.addr %s218, 2
        %s220 = smul.addr %s219, 4
        %s221 = scalar_lea.vmem %s1, %s220
        %p222 = scmp.lt.s32.totalorder %s22, 1
        %s223 = scalar_select %p222, %s22, 1
        %s224 = smul.addr %s223, 2
        %s225 = smul.addr %s224, 4
        %s226 = scalar_lea.vmem %s2, %s225
        %v227 = vld [vmem:[%s0] sm:$0xff]
        %v228 = vld [vmem:[%s0 + $0x8] sm:$0xff]
        %v229 = vld [vmem:[%s0 + $0x10] sm:$0xff]
        %v230 = vld [vmem:[%s0 + $0x18] sm:$0xff]
        %v231 = vld [vmem:[%s0 + $0x20] sm:$0xff]
        %v232 = vld [vmem:[%s0 + $0x28] sm:$0xff]
        %v233 = vld [vmem:[%s0 + $0x30] sm:$0xff]
        %v234 = vld [vmem:[%s0 + $0x38] sm:$0xff]
        %v235 = vld [vmem:[%s0 + $0x40] sm:$0xff]
        %v236 = vld [vmem:[%s0 + $0x48] sm:$0xff]
        %v237 = vld [vmem:[%s0 + $0x50] sm:$0xff]
        %v238 = vld [vmem:[%s0 + $0x58] sm:$0xff]
        %v239 = vld [vmem:[%s0 + $0x60] sm:$0xff]
        %v240 = vld [vmem:[%s0 + $0x68] sm:$0xff]
        %v241 = vld [vmem:[%s0 + $0x70] sm:$0xff]
        %v242 = vld [vmem:[%s0 + $0x78] sm:$0xff]
        %v243 = vld [vmem:[%s0 + $0x80] sm:$0xff]
        %v244 = vld [vmem:[%s0 + $0x88] sm:$0xff]
        %v245 = vld [vmem:[%s0 + $0x90] sm:$0xff]
        %v246 = vld [vmem:[%s0 + $0x98] sm:$0xff]
        %v247 = vld [vmem:[%s0 + $0xa0] sm:$0xff]
        %v248 = vld [vmem:[%s0 + $0xa8] sm:$0xff]
        %v249 = vld [vmem:[%s0 + $0xb0] sm:$0xff]
        %v250 = vld [vmem:[%s0 + $0xb8] sm:$0xff]
        %v251 = vld [vmem:[%s0 + $0xc0] sm:$0xff]
        %v252 = vld [vmem:[%s0 + $0xc8] sm:$0xff]
        %v253 = vld [vmem:[%s0 + $0xd0] sm:$0xff]
        %v254 = vld [vmem:[%s0 + $0xd8] sm:$0xff]
        %v255 = vld [vmem:[%s0 + $0xe0] sm:$0xff]
        %v256 = vld [vmem:[%s0 + $0xe8] sm:$0xff]
        %v257 = vld [vmem:[%s0 + $0xf0] sm:$0xff]
        %v258 = vld [vmem:[%s0 + $0xf8] sm:$0xff]
        %v259 = vld [vmem:[%s221] sm:$0xff]
        %v260 = vld [vmem:[%s226] sm:$0xff]
        %v262 = vcombine.high %v259, %v259
        %264 = vmatprep.subr.mxu0 0.0
        %265 = vmatpush1.msra.mxu0 %v227
        %266 = vmatprep.subr.mxu0 0.0
        %267 = vmatpush1.msra.mxu0 %v228
        %268 = vmatprep.subr.mxu0 0.0
        %269 = vmatpush1.msra.mxu0 %v229
        %270 = vmatprep.subr.mxu0 0.0
        %271 = vmatpush1.msra.mxu0 %v230
        %272 = vmatprep.subr.mxu0 0.0
        %273 = vmatpush1.msra.mxu0 %v231
        %274 = vmatprep.subr.mxu0 0.0
        %275 = vmatpush1.msra.mxu0 %v232
        %276 = vmatprep.subr.mxu0 0.0
        %277 = vmatpush1.msra.mxu0 %v233
        %278 = vmatprep.subr.mxu0 0.0
        %279 = vmatpush1.msra.mxu0 %v234
        %280 = vmatprep.subr.mxu0 0.0
        %281 = vmatpush1.msra.mxu0 %v235
        %282 = vmatprep.subr.mxu0 0.0
        %283 = vmatpush1.msra.mxu0 %v236
        %284 = vmatprep.subr.mxu0 0.0
        %285 = vmatpush1.msra.mxu0 %v237
        %286 = vmatprep.subr.mxu0 0.0
        %287 = vmatpush1.msra.mxu0 %v238
        %288 = vmatprep.subr.mxu0 0.0
        %289 = vmatpush1.msra.mxu0 %v239
        %290 = vmatprep.subr.mxu0 0.0
        %291 = vmatpush1.msra.mxu0 %v240
        %292 = vmatprep.subr.mxu0 0.0
        %293 = vmatpush1.msra.mxu0 %v241
        %294 = vmatprep.subr.mxu0 0.0
        %295 = vmatpush1.msra.mxu0 %v242
        %296 = vmatprep.subr.mxu0 0.0
        %297 = vmatpush1.msra.mxu0 %v243
        %298 = vmatprep.subr.mxu0 0.0
        %299 = vmatpush1.msra.mxu0 %v244
        %300 = vmatprep.subr.mxu0 0.0
        %301 = vmatpush1.msra.mxu0 %v245
        %302 = vmatprep.subr.mxu0 0.0
        %303 = vmatpush1.msra.mxu0 %v246
        %304 = vmatprep.subr.mxu0 0.0
        %305 = vmatpush1.msra.mxu0 %v247
        %306 = vmatprep.subr.mxu0 0.0
        %307 = vmatpush1.msra.mxu0 %v248
        %308 = vmatprep.subr.mxu0 0.0
        %309 = vmatpush1.msra.mxu0 %v249
        %310 = vmatprep.subr.mxu0 0.0
        %311 = vmatpush1.msra.mxu0 %v250
        %312 = vmatprep.subr.mxu0 0.0
        %313 = vmatpush1.msra.mxu0 %v251
        %314 = vmatprep.subr.mxu0 0.0
        %315 = vmatpush1.msra.mxu0 %v252
        %316 = vmatprep.subr.mxu0 0.0
        %317 = vmatpush1.msra.mxu0 %v253
        %318 = vmatprep.subr.mxu0 0.0
        %319 = vmatpush1.msra.mxu0 %v254
        %320 = vmatprep.subr.mxu0 0.0
        %321 = vmatpush1.msra.mxu0 %v255
        %322 = vmatprep.subr.mxu0 0.0
        %323 = vmatpush1.msra.mxu0 %v256
        %324 = vmatprep.subr.mxu0 0.0
        %325 = vmatpush1.msra.mxu0 %v257
        %326 = vmatprep.subr.mxu0 0.0
        %327 = vmatpush1.msra.mxu0 %v258
        %328 = vmatprep.mubr.f32.mxu0 %v262
        %329 = vmatmul.mubr.f32.gmra.mrb[0].mxu0 %v259
        %v330 = vpop.f32.mrb[0].mxu0
        %v331 = vadd.f32 0.0, %v330
        %v332 = vpop.f32.mrb[0].mxu0
        %333 = vdwg.mxu0
        %v335 = vcombine.high %v260, %v260
        %337 = vmatprep.subr.mxu0 0.0
        %338 = vmatpush1.msra.mxu0 %v227
        %339 = vmatprep.subr.mxu0 0.0
        %340 = vmatpush1.msra.mxu0 %v228
        %341 = vmatprep.subr.mxu0 0.0
        %342 = vmatpush1.msra.mxu0 %v229
        %343 = vmatprep.subr.mxu0 0.0
        %344 = vmatpush1.msra.mxu0 %v230
        %345 = vmatprep.subr.mxu0 0.0
        %346 = vmatpush1.msra.mxu0 %v231
        %347 = vmatprep.subr.mxu0 0.0
        %348 = vmatpush1.msra.mxu0 %v232
        %349 = vmatprep.subr.mxu0 0.0
        %350 = vmatpush1.msra.mxu0 %v233
        %351 = vmatprep.subr.mxu0 0.0
        %352 = vmatpush1.msra.mxu0 %v234
        %353 = vmatprep.subr.mxu0 0.0
        %354 = vmatpush1.msra.mxu0 %v235
        %355 = vmatprep.subr.mxu0 0.0
        %356 = vmatpush1.msra.mxu0 %v236
        %357 = vmatprep.subr.mxu0 0.0
        %358 = vmatpush1.msra.mxu0 %v237
        %359 = vmatprep.subr.mxu0 0.0
        %360 = vmatpush1.msra.mxu0 %v238
        %361 = vmatprep.subr.mxu0 0.0
        %362 = vmatpush1.msra.mxu0 %v239
        %363 = vmatprep.subr.mxu0 0.0
        %364 = vmatpush1.msra.mxu0 %v240
        %365 = vmatprep.subr.mxu0 0.0
        %366 = vmatpush1.msra.mxu0 %v241
        %367 = vmatprep.subr.mxu0 0.0
        %368 = vmatpush1.msra.mxu0 %v242
        %369 = vmatprep.subr.mxu0 0.0
        %370 = vmatpush1.msra.mxu0 %v243
        %371 = vmatprep.subr.mxu0 0.0
        %372 = vmatpush1.msra.mxu0 %v244
        %373 = vmatprep.subr.mxu0 0.0
        %374 = vmatpush1.msra.mxu0 %v245
        %375 = vmatprep.subr.mxu0 0.0
        %376 = vmatpush1.msra.mxu0 %v246
        %377 = vmatprep.subr.mxu0 0.0
        %378 = vmatpush1.msra.mxu0 %v247
        %379 = vmatprep.subr.mxu0 0.0
        %380 = vmatpush1.msra.mxu0 %v248
        %381 = vmatprep.subr.mxu0 0.0
        %382 = vmatpush1.msra.mxu0 %v249
        %383 = vmatprep.subr.mxu0 0.0
        %384 = vmatpush1.msra.mxu0 %v250
        %385 = vmatprep.subr.mxu0 0.0
        %386 = vmatpush1.msra.mxu0 %v251
        %387 = vmatprep.subr.mxu0 0.0
        %388 = vmatpush1.msra.mxu0 %v252
        %389 = vmatprep.subr.mxu0 0.0
        %390 = vmatpush1.msra.mxu0 %v253
        %391 = vmatprep.subr.mxu0 0.0
        %392 = vmatpush1.msra.mxu0 %v254
        %393 = vmatprep.subr.mxu0 0.0
        %394 = vmatpush1.msra.mxu0 %v255
        %395 = vmatprep.subr.mxu0 0.0
        %396 = vmatpush1.msra.mxu0 %v256
        %397 = vmatprep.subr.mxu0 0.0
        %398 = vmatpush1.msra.mxu0 %v257
        %399 = vmatprep.subr.mxu0 0.0
        %400 = vmatpush1.msra.mxu0 %v258
        %401 = vmatprep.mubr.f32.mxu0 %v335
        %402 = vmatmul.mubr.f32.gmra.mrb[0].mxu0 %v260
        %v403 = vpop.f32.mrb[0].mxu0
        %v404 = vadd.f32 0.0, %v403
        %v405 = vpop.f32.mrb[0].mxu0
        %406 = vdwg.mxu0
        %v407 = vmul.f32 %v404, 0.25
        %vm408 = vcmask 519168
        %409 = vst.msk [vmem:[%s209] sm:$0xf] %vm408, %v331
        %410 = vst.msk [vmem:[%s216] sm:$0xf] %vm408, %v407
        %s411 = sand.u32 %s103, 1
        %s412 = scalar_lea.sflag [#allocation3], %s411
        %s413 = sand.u32 %s103, 1
        %s414 = smul.addr %s413, 4
        %s415 = scalar_lea.vmem [#allocation2], %s414
        %s416 = sand.u32 %s129, 1
        %s417 = scalar_lea.sflag [#allocation5], %s416
        %s418 = sand.u32 %s129, 1
        %s419 = smul.addr %s418, 4
        %s420 = scalar_lea.vmem [#allocation4], %s419
        // Predicated region
        $region33: #{tpu_custom_call.1} parent=31 // pred_check
          %p421 = pneg %p113
        $region34: #{tpu_custom_call.1} parent=31 // pred_check_branch
          %423 = sbr.rel (%p421) target = $region36
        $region35: #{tpu_custom_call.1} parent=31 // pred_region
          %s425 = ssub.s32 64, 64
          %426 = vsyncadd %s412, %s425
          %s427 = smul.addr %s22, 64
          %s428 = scalar_lea.hbm %s3, %s427
          %s430 = sshll.u32 %s415, 4
          %s431 = int_to_ptr.vmem [resolvable:$true] %s430
          %433 = dma.vmem_to_hbm [thread:$0]  %s431, 64, %s428, %s412
        $region36: #{tpu_custom_call.1} parent=31 // pred_fallthru
          _
        // Predicated region
        $region37: #{tpu_custom_call.1} parent=31 // pred_check
          %p434 = pneg %p139
        $region38: #{tpu_custom_call.1} parent=31 // pred_check_branch
          %436 = sbr.rel (%p434) target = $region40
        $region39: #{tpu_custom_call.1} parent=31 // pred_region
          %s438 = ssub.s32 64, 64
          %439 = vsyncadd %s417, %s438
          %s440 = smul.addr %s22, 64
          %s441 = scalar_lea.hbm %s4, %s440
          %s443 = sshll.u32 %s420, 4
          %s444 = int_to_ptr.vmem [resolvable:$true] %s443
          %446 = dma.vmem_to_hbm [thread:$0]  %s444, 64, %s441, %s417
        $region40: #{tpu_custom_call.1} parent=31 // pred_fallthru
          _
      $region32: #{tpu_custom_call.1} parent=5 // pred_fallthru
        _
      %p447 = scmp.le.s32.totalorder 2, %s17
      // Predicated region
      $region41: #{tpu_custom_call.1} parent=5 // pred_check
        %p448 = pneg %p447
      $region42: #{tpu_custom_call.1} parent=5 // pred_check_branch
        %450 = sbr.rel (%p448) target = $region44
      $region43: #{tpu_custom_call.1} parent=5 // pred_region
        %s451 = ssub.s32 %s17, 2
        // Predicated region
        $region45: #{tpu_custom_call.1} parent=43 // pred_check
          %p452 = pneg %p119
        $region46: #{tpu_custom_call.1} parent=43 // pred_check_branch
          %454 = sbr.rel (%p452) target = $region48
        $region47: #{tpu_custom_call.1} parent=43 // pred_region
          %s455 = sand.u32 %s104, 1
          %s456 = scalar_lea.sflag [#allocation3], %s455
          %s457 = sand.u32 %s104, 1
          %s458 = smul.addr %s457, 4
          %s459 = scalar_lea.vmem [#allocation2], %s458
          %460 = dma.done %s456, 64
        $region48: #{tpu_custom_call.1} parent=43 // pred_fallthru
          _
        // Predicated region
        $region49: #{tpu_custom_call.1} parent=43 // pred_check
          %p461 = pneg %p145
        $region50: #{tpu_custom_call.1} parent=43 // pred_check_branch
          %463 = sbr.rel (%p461) target = $region52
        $region51: #{tpu_custom_call.1} parent=43 // pred_region
          %s464 = sand.u32 %s130, 1
          %s465 = scalar_lea.sflag [#allocation5], %s464
          %s466 = sand.u32 %s130, 1
          %s467 = smul.addr %s466, 4
          %s468 = scalar_lea.vmem [#allocation4], %s467
          %469 = dma.done %s465, 64
        $region52: #{tpu_custom_call.1} parent=43 // pred_fallthru
          _
      $region44: #{tpu_custom_call.1} parent=5 // pred_fallthru
        _
    $region6: #{tpu_custom_call.1} parent=1 // loop_footer
      %s21 = sadd.s32 1, %s17
    $region7: #{tpu_custom_call.1} parent=1 // loop_footer_branch
      %16 = sbr.rel target = $region3
    $region8: #{tpu_custom_call.1} parent=1 // loop_exit
      _
    %470 = vsyncpa [#allocation3], 1
    %s471 = scalar_lea.sflag [#allocation3], 1
    %472 = vsyncpa %s471, 1
    %473 = vsyncpa [#allocation5], 1
    %s474 = scalar_lea.sflag [#allocation5], 1
    %475 = vsyncpa %s474, 1

</llo_original>
